<compile_context>
chip_gen: v6e
topology: v6e:2x2x1
jax: 0.10.0
libtpu: 0.0.40
codegen_flags: <defaults>
</compile_context>

<pallas_src>
import jax
import jax.numpy as jnp
from jax.experimental import pallas as pl
from jax.experimental.pallas import tpu as pltpu


# ---------------------------------------------------------------------------
# Pass 1: prototype sums (reduction over HW tiles, accumulated in the output).
# ---------------------------------------------------------------------------
def _make_proto_sums_kernel(HW, T, with_mask):
    """Blocks: x (1,C,T), p/m (1,1,T), num (1,1,C,2), den (1,1,1,2).

    num col 0 = sum x*pred*mask (pos), col 1 = sum x*(1-pred)*mask (neg)
    den col 0 = sum pred*mask,          col 1 = sum (1-pred)*mask
    """

    def body(x_ref, p_ref, m_ref, num_ref, den_ref):
        k = pl.program_id(2)

        @pl.when(k == 0)
        def _():
            num_ref[...] = jnp.zeros_like(num_ref)
            den_ref[...] = jnp.zeros_like(den_ref)

        # Global HW-tile index (axis 1 is the 2-way parallel split of the
        # reduction; axis 2 is the per-split reduction axis).
        tile = pl.program_id(1) * pl.num_programs(2) + k
        start = tile * T

        x = x_ref[0]                                    # (C, T) native dtype
        p = p_ref[0].astype(jnp.float32)                # (1, T)
        if m_ref is not None:
            mm = m_ref[0].astype(jnp.float32)           # (1, T)
            pm = p * mm                                 # pred * mask
            rpm = mm - pm                               # (1 - pred) * mask
        else:
            pm = p
            rpm = 1.0 - p

        def accumulate(xv, pmv, rpmv):
            wr = jnp.concatenate([pmv, rpmv], axis=0)   # (2, T) f32
            wr_mx = wr if xv.dtype == jnp.float32 else wr.astype(xv.dtype)
            # (C, T) . (2, T) contracting the lane axis -> (C, 2) on the MXU.
            num_ref[...] += jax.lax.dot_general(
                xv, wr_mx,
                dimension_numbers=(((1,), (1,)), ((), ())),
                preferred_element_type=jnp.float32)[None, None]
            den_ref[...] += jnp.concatenate(
                [jnp.sum(pmv, axis=1, keepdims=True),
                 jnp.sum(rpmv, axis=1, keepdims=True)], axis=1)[None, None]

        is_full = start + T <= HW                       # tile fully in-bounds?

        @pl.when(is_full)
        def _():                                        # fast path: no masking
            accumulate(x, pm, rpm)

        @pl.when(jnp.logical_not(is_full))
        def _():
            # Partial (or split-overrun) tile: zero invalid lanes of x as well —
            # stale VMEM could hold NaN/Inf and 0*NaN would poison the sums.
            lane = jax.lax.broadcasted_iota(jnp.int32, (1, T), 1)
            valid = lane < (HW - start)                 # (1, T) bool
            accumulate(jnp.where(valid, x, jnp.zeros_like(x)),
                       jnp.where(valid, pm, 0.0),
                       jnp.where(valid, rpm, 0.0))

    if with_mask:
        def kernel(x_ref, p_ref, m_ref, num_ref, den_ref):
            body(x_ref, p_ref, m_ref, num_ref, den_ref)
    else:
        def kernel(x_ref, p_ref, num_ref, den_ref):
            body(x_ref, p_ref, None, num_ref, den_ref)
    return kernel


# ---------------------------------------------------------------------------
# Pass 2: logits via (2,C)@(C,T) matmul + bias, 2-class sigmoid softmax.
# ---------------------------------------------------------------------------
def _proto_softmax_kernel(w_ref, b_ref, x_ref, o_ref):
    # w_ref: (1, 2, C) rows = [2*neg_proto, 2*pos_proto]   (f32)
    # b_ref: (1, 2, 1) rows = [-||neg||^2, -||pos||^2]     (f32)
    # x_ref: (1, C, T) native dtype; o_ref: (1, 2, T) final dtype.
    # Stale lanes in a partial x tile only affect output lanes that Pallas
    # masks on the partial store, so no in-kernel masking is needed here.
    x = x_ref[0]                                              # (C, T)
    w = w_ref[0]                                              # (2, C)
    if x.dtype != jnp.float32:
        w = w.astype(x.dtype)
    bias = b_ref[0]                                           # (2, 1) f32
    logits = jnp.dot(w, x, preferred_element_type=jnp.float32) + bias   # (2, T)
    # 2-class softmax == sigmoid of the logit difference (one exp per pixel).
    d = logits[1:2, :] - logits[0:1, :]                       # (1, T)
    p_pos = 1.0 / (1.0 + jnp.exp(-d))
    o_ref[0] = jnp.concatenate([1.0 - p_pos, p_pos], axis=0).astype(o_ref.dtype)


# ---------------------------------------------------------------------------
# Wrapper
# ---------------------------------------------------------------------------
def _round_up(a, m):
    return (a + m - 1) // m * m


def _vmem_capacity_bytes():
    try:
        return int(pltpu.get_tpu_info().vmem_capacity_bytes)
    except Exception:
        return 0


def _tile_and_vmem(C, x_itemsize, HW):
    """Generation-aware lane tile (multiple of 128) and scoped-VMEM budget."""
    cap = _vmem_capacity_bytes()
    if cap and cap <= 96 * 1024 * 1024:       # v7x-class: 64 MiB physical VMEM
        vmem_limit = 48 * 1024 * 1024
        target = 3 * 1024 * 1024
    elif cap:                                 # v5e / v6e: 128 MiB physical VMEM
        vmem_limit = 64 * 1024 * 1024
        target = 6 * 1024 * 1024
    else:                                     # unknown: conservative defaults
        vmem_limit = 32 * 1024 * 1024
        target = 2 * 1024 * 1024
    # Post-layout bytes per lane-column of an x tile (sublane padding: 8 rows
    # for 4-byte dtypes, 16 for 2-byte, 32 for 1-byte).
    sub = 8 * max(1, 4 // max(1, x_itemsize))
    bytes_per_lane = _round_up(C, sub) * x_itemsize
    t = (target // max(1, bytes_per_lane)) // 128 * 128
    t = max(128, min(32768, t))
    t = min(t, _round_up(HW, 128))
    return t, vmem_limit


@jax.jit
def protoseg_forward(xfeat, pred, mask=None):
    """xfeat: (B, C, H, W), pred: (B, 1, H, W), mask: (B, 1, H, W) or None.
    Returns (B, 2, H, W) = softmax([nfeat, pfeat], axis=1) in xfeat.dtype."""
    B, C, H, W = xfeat.shape
    HW = H * W

    x = xfeat.reshape(B, C, HW)                     # native dtype streams
    p = pred.reshape(B, 1, HW)
    m = None if mask is None else mask.reshape(B, 1, HW)

    T, vmem_limit = _tile_and_vmem(C, x.dtype.itemsize, HW)
    n_hw = pl.cdiv(HW, T)
    n_split = 2 if n_hw >= 2 else 1                 # keep both v7x TCs busy at B=1
    n_k = pl.cdiv(n_hw, n_split)

    def hw_map(b, s, k):
        # Clamp so split-overrun tiles DMA a valid block (kernel masks them out).
        return (b, 0, jnp.minimum(s * n_k + k, n_hw - 1))

    in_arrays = (x, p) if m is None else (x, p, m)
    in_specs = [pl.BlockSpec((1, C, T), hw_map),
                pl.BlockSpec((1, 1, T), hw_map)]
    if m is not None:
        in_specs.append(pl.BlockSpec((1, 1, T), hw_map))

    x_bytes = B * C * HW * x.dtype.itemsize
    aux_bytes = B * HW * p.dtype.itemsize + (0 if m is None
                                             else B * HW * m.dtype.itemsize)

    # ---- Pass 1: prototype numerators / denominators --------------------------
    num, den = pl.pallas_call(
        _make_proto_sums_kernel(HW, T, with_mask=(m is not None)),
        out_shape=(jax.ShapeDtypeStruct((B, n_split, C, 2), jnp.float32),
                   jax.ShapeDtypeStruct((B, n_split, 1, 2), jnp.float32)),
        grid_spec=pltpu.PrefetchScalarGridSpec(
            num_scalar_prefetch=0,
            grid=(B, n_split, n_k),
            in_specs=in_specs,
            out_specs=[pl.BlockSpec((1, 1, C, 2), lambda b, s, k: (b, s, 0, 0)),
                       pl.BlockSpec((1, 1, 1, 2), lambda b, s, k: (b, s, 0, 0))],
        ),
        compiler_params=pltpu.CompilerParams(
            dimension_semantics=("parallel", "parallel", "arbitrary"),
            vmem_limit_bytes=vmem_limit,
        ),
        cost_estimate=pl.CostEstimate(
            flops=(4 * C + 8) * B * HW,
            transcendentals=0,
            bytes_accessed=x_bytes + aux_bytes),
    )(*in_arrays)

    # ---- Tiny O(B*C) epilogue in plain JAX -------------------------------------
    num_t = jnp.sum(num, axis=1)                    # (B, C, 2) over the 2-way split
    den_t = jnp.sum(den, axis=1)                    # (B, 1, 2)
    # NOTE: division by zero (empty pos/neg region) -> NaN, matching torch.
    pos_proto = num_t[:, :, 0] / den_t[:, :, 0]     # (B, C)
    neg_proto = num_t[:, :, 1] / den_t[:, :, 1]     # (B, C)

    # softmax-shift reformulation: logits = 2*proto.x - ||proto||^2 (row0=neg, row1=pos)
    w = (2.0 * jnp.stack([neg_proto, pos_proto], axis=1)).astype(jnp.float32)  # (B,2,C)
    bias = -jnp.stack([jnp.sum(neg_proto * neg_proto, axis=-1),
                       jnp.sum(pos_proto * pos_proto, axis=-1)], axis=1)        # (B,2)
    bias = bias[..., None].astype(jnp.float32)                                  # (B,2,1)

    # ---- Pass 2: per-pixel logits + 2-class softmax (fully parallel) -----------
    out = pl.pallas_call(
        _proto_softmax_kernel,
        out_shape=jax.ShapeDtypeStruct((B, 2, HW), xfeat.dtype),
        grid_spec=pltpu.PrefetchScalarGridSpec(
            num_scalar_prefetch=0,
            grid=(B, n_hw),
            in_specs=[pl.BlockSpec((1, 2, C), lambda b, k: (b, 0, 0)),
                      pl.BlockSpec((1, 2, 1), lambda b, k: (b, 0, 0)),
                      pl.BlockSpec((1, C, T), lambda b, k: (b, 0, k))],
            out_specs=pl.BlockSpec((1, 2, T), lambda b, k: (b, 0, k)),
        ),
        compiler_params=pltpu.CompilerParams(
            dimension_semantics=("parallel", "parallel"),
            vmem_limit_bytes=vmem_limit,
        ),
        cost_estimate=pl.CostEstimate(
            flops=(4 * C + 8) * B * HW,
            transcendentals=B * HW,
            bytes_accessed=x_bytes + B * 2 * HW * xfeat.dtype.itemsize),
    )(w, bias, x)

    return out.reshape(B, 2, H, W)


# ---------------------------------------------------------------------------
# Pure-JAX reference mirroring the torch module (2d case)
# ---------------------------------------------------------------------------
def _reference(xfeat, pred, mask=None):
    dims = (2, 3)
    if mask is None:
        mask = jnp.ones_like(pred)
    pos = jnp.sum(xfeat * pred * mask, axis=dims, keepdims=True)
    npos = jnp.sum(pred * mask, axis=dims, keepdims=True)
    pos = pos / npos
    rpred = 1 - pred
    neg = jnp.sum(xfeat * rpred * mask, axis=dims, keepdims=True)
    nneg = jnp.sum(rpred * mask, axis=dims, keepdims=True)
    neg = neg / nneg
    pfeat = -jnp.sum((xfeat - pos) ** 2, axis=1, keepdims=True)
    nfeat = -jnp.sum((xfeat - neg) ** 2, axis=1, keepdims=True)
    dis = jnp.concatenate([nfeat, pfeat], axis=1)
    return jax.nn.softmax(dis, axis=1)


if __name__ == "__main__":
    key = jax.random.PRNGKey(0)
    k1, k2, k3 = jax.random.split(key, 3)
    B, C, H, W = 2, 4, 16, 16
    xfeat = jax.random.normal(k1, (B, C, H, W), jnp.float32)
    pred = jax.nn.sigmoid(jax.random.normal(k2, (B, 1, H, W), jnp.float32))
    mask = (jax.random.uniform(k3, (B, 1, H, W)) > 0.3).astype(jnp.float32)

    # no-mask path
    out = jax.block_until_ready(protoseg_forward(xfeat, pred))
    ref = _reference(xfeat, pred)
    assert out.shape == (B, 2, H, W)
    assert jnp.allclose(out, ref, atol=1e-5, rtol=1e-5), "mismatch (no mask)"

    # masked path
    out_m = jax.block_until_ready(protoseg_forward(xfeat, pred, mask))
    ref_m = _reference(xfeat, pred, mask)
    assert jnp.allclose(out_m, ref_m, atol=1e-5, rtol=1e-5), "mismatch (mask)"

    # non-128-multiple spatial size exercises the in-kernel partial-tile masking
    H2, W2 = 10, 12
    x2 = jax.random.normal(k1, (B, C, H2, W2), jnp.float32)
    p2 = jax.nn.sigmoid(jax.random.normal(k2, (B, 1, H2, W2), jnp.float32))
    out2 = jax.block_until_ready(protoseg_forward(x2, p2))
    ref2 = _reference(x2, p2)
    assert jnp.allclose(out2, ref2, atol=1e-5, rtol=1e-5), "mismatch (partial tile)"

    print("KERNEL_OK")
</pallas_src>

<mosaic_0001>
module attributes {stable_mosaic.version = 11 : i64} {
  func.func @kernel(%arg0: i32, %arg1: i32, %arg2: i32, %arg3: memref<1x4x256xf32, #tpu.memory_space<vmem>>, %arg4: memref<1x1x256xf32, #tpu.memory_space<vmem>>, %arg5: memref<1x1x4x2xf32, #tpu.memory_space<vmem>>, %arg6: memref<1x1x1x2xf32, #tpu.memory_space<vmem>>) attributes {dimension_semantics = [#tpu.dimension_semantics<parallel>, #tpu.dimension_semantics<parallel>, #tpu.dimension_semantics<arbitrary>], iteration_bounds = array<i64: 2, 1, 1>, scalar_prefetch = 0 : i64, scratch_operands = 0 : i64, tpu.core_type = #tpu.core_type<tc>, window_params = [{transform_indices = @transform_0, window_bounds = array<i64: 1, 4, 256>}, {transform_indices = @transform_1, window_bounds = array<i64: 1, 1, 256>}, {transform_indices = @transform_2, window_bounds = array<i64: 1, 1, 4, 2>}, {transform_indices = @transform_3, window_bounds = array<i64: 1, 1, 1, 2>}]} {
    %c0_i32 = arith.constant 0 : i32
    %0 = arith.cmpi eq, %arg2, %c0_i32 : i32
    %1 = arith.extui %0 : i1 to i32
    %c0_i32_0 = arith.constant 0 : i32
    %2 = arith.cmpi ne, %1, %c0_i32_0 : i32
    scf.if %2 {
      %cst_10 = arith.constant 0.000000e+00 : f32
      %19 = vector.broadcast %cst_10 : f32 to vector<1x1x4x2xf32>
      %c0_11 = arith.constant 0 : index
      %c0_12 = arith.constant 0 : index
      %c0_13 = arith.constant 0 : index
      %c0_14 = arith.constant 0 : index
      %20 = vector.load %arg5[%c0_11, %c0_12, %c0_13, %c0_14] : memref<1x1x4x2xf32, #tpu.memory_space<vmem>>, vector<1x1x4x2xf32>
      tpu.vector_store %arg5[%c0_11, %c0_12, %c0_13, %c0_14], %19 {strides = array<i32>} : memref<1x1x4x2xf32, #tpu.memory_space<vmem>>, vector<1x1x4x2xf32>,
      %cst_15 = arith.constant 0.000000e+00 : f32
      %21 = vector.broadcast %cst_15 : f32 to vector<1x1x1x2xf32>
      %c0_16 = arith.constant 0 : index
      %c0_17 = arith.constant 0 : index
      %c0_18 = arith.constant 0 : index
      %c0_19 = arith.constant 0 : index
      %22 = vector.load %arg6[%c0_16, %c0_17, %c0_18, %c0_19] : memref<1x1x1x2xf32, #tpu.memory_space<vmem>>, vector<1x1x1x2xf32>
      tpu.vector_store %arg6[%c0_16, %c0_17, %c0_18, %c0_19], %21 {strides = array<i32>} : memref<1x1x1x2xf32, #tpu.memory_space<vmem>>, vector<1x1x1x2xf32>,
    } else {
    }
    %c1_i32 = arith.constant 1 : i32
    %3 = arith.muli %arg1, %c1_i32 : i32
    %4 = arith.addi %3, %arg2 : i32
    %c256_i32 = arith.constant 256 : i32
    %5 = arith.muli %4, %c256_i32 : i32
    %c0 = arith.constant 0 : index
    %c0_1 = arith.constant 0 : index
    %c0_2 = arith.constant 0 : index
    %6 = vector.load %arg3[%c0, %c0_1, %c0_2] : memref<1x4x256xf32, #tpu.memory_space<vmem>>, vector<1x4x256xf32>
    %7 = vector.shape_cast %6 : vector<1x4x256xf32> to vector<4x256xf32>
    %c0_3 = arith.constant 0 : index
    %c0_4 = arith.constant 0 : index
    %c0_5 = arith.constant 0 : index
    %8 = vector.load %arg4[%c0_3, %c0_4, %c0_5] : memref<1x1x256xf32, #tpu.memory_space<vmem>>, vector<1x1x256xf32>
    %9 = vector.shape_cast %8 : vector<1x1x256xf32> to vector<1x256xf32>
    %cst = arith.constant 1.000000e+00 : f32
    %10 = vector.broadcast %cst : f32 to vector<1x256xf32>
    %11 = arith.subf %10, %9 : vector<1x256xf32>
    %c256_i32_6 = arith.constant 256 : i32
    %12 = arith.addi %5, %c256_i32_6 : i32
    %c256_i32_7 = arith.constant 256 : i32
    %13 = arith.cmpi sle, %12, %c256_i32_7 : i32
    %14 = arith.extui %13 : i1 to i32
    %c0_i32_8 = arith.constant 0 : i32
    %15 = arith.cmpi ne, %14, %c0_i32_8 : i32
    scf.if %15 {
      %19 = tpu.concatenate %9, %11 in 0 : vector<1x256xf32>, vector<1x256xf32> -> vector<2x256xf32>
      %c0_10 = arith.constant 0 : index
      %c0_11 = arith.constant 0 : index
      %c0_12 = arith.constant 0 : index
      %c0_13 = arith.constant 0 : index
      %20 = vector.load %arg5[%c0_10, %c0_11, %c0_12, %c0_13] : memref<1x1x4x2xf32, #tpu.memory_space<vmem>>, vector<1x1x4x2xf32>
      %cst_14 = arith.constant dense<0.000000e+00> : vector<4x2xf32>
      %21 = tpu.matmul %7, %19, %cst_14 {dimension_numbers = #tpu.dot_dimension_numbers<[1], [1], [0], [0], [0, 0, 1, 0], [], []>} : vector<4x256xf32>, vector<2x256xf32>, vector<4x2xf32> -> vector<4x2xf32>
      %22 = vector.shape_cast %21 : vector<4x2xf32> to vector<1x1x4x2xf32>
      %23 = arith.addf %20, %22 : vector<1x1x4x2xf32>
      %c0_15 = arith.constant 0 : index
      %c0_16 = arith.constant 0 : index
      %c0_17 = arith.constant 0 : index
      %c0_18 = arith.constant 0 : index
      %24 = vector.load %arg5[%c0_15, %c0_16, %c0_17, %c0_18] : memref<1x1x4x2xf32, #tpu.memory_space<vmem>>, vector<1x1x4x2xf32>
      tpu.vector_store %arg5[%c0_15, %c0_16, %c0_17, %c0_18], %23 {strides = array<i32>} : memref<1x1x4x2xf32, #tpu.memory_space<vmem>>, vector<1x1x4x2xf32>,
      %c0_19 = arith.constant 0 : index
      %c0_20 = arith.constant 0 : index
      %c0_21 = arith.constant 0 : index
      %c0_22 = arith.constant 0 : index
      %25 = vector.load %arg6[%c0_19, %c0_20, %c0_21, %c0_22] : memref<1x1x1x2xf32, #tpu.memory_space<vmem>>, vector<1x1x1x2xf32>
      %cst_23 = arith.constant dense<0.000000e+00> : vector<1xf32>
      %26 = vector.multi_reduction <add>, %9, %cst_23 [1] : vector<1x256xf32> to vector<1xf32>
      %27 = vector.shape_cast %26 : vector<1xf32> to vector<1x1xf32>
      %cst_24 = arith.constant dense<0.000000e+00> : vector<1xf32>
      %28 = vector.multi_reduction <add>, %11, %cst_24 [1] : vector<1x256xf32> to vector<1xf32>
      %29 = vector.shape_cast %28 : vector<1xf32> to vector<1x1xf32>
      %30 = tpu.concatenate %27, %29 in 1 : vector<1x1xf32>, vector<1x1xf32> -> vector<1x2xf32>
      %31 = vector.shape_cast %30 : vector<1x2xf32> to vector<1x1x1x2xf32>
      %32 = arith.addf %25, %31 : vector<1x1x1x2xf32>
      %c0_25 = arith.constant 0 : index
      %c0_26 = arith.constant 0 : index
      %c0_27 = arith.constant 0 : index
      %c0_28 = arith.constant 0 : index
      %33 = vector.load %arg6[%c0_25, %c0_26, %c0_27, %c0_28] : memref<1x1x1x2xf32, #tpu.memory_space<vmem>>, vector<1x1x1x2xf32>
      tpu.vector_store %arg6[%c0_25, %c0_26, %c0_27, %c0_28], %32 {strides = array<i32>} : memref<1x1x1x2xf32, #tpu.memory_space<vmem>>, vector<1x1x1x2xf32>,
    } else {
    }
    %true = arith.constant true
    %16 = arith.xori %13, %true : i1
    %17 = arith.extui %16 : i1 to i32
    %c0_i32_9 = arith.constant 0 : i32
    %18 = arith.cmpi ne, %17, %c0_i32_9 : i32
    scf.if %18 {
      %19 = tpu.iota {dimensions = array<i32: 1>} : vector<1x256xi32>
      %c256_i32_10 = arith.constant 256 : i32
      %20 = arith.subi %c256_i32_10, %5 : i32
      %21 = vector.broadcast %20 : i32 to vector<1x256xi32>
      %22 = arith.cmpi slt, %19, %21 : vector<1x256xi32>
      %cst_11 = arith.constant 0.000000e+00 : f32
      %23 = vector.broadcast %cst_11 : f32 to vector<4x256xf32>
      %24 = vector.shape_cast %22 : vector<1x256xi1> to vector<1x256xi1>
      %25 = vector.broadcast %24 : vector<1x256xi1> to vector<4x256xi1>
      %26 = arith.select %25, %7, %23 : vector<4x256xi1>, vector<4x256xf32>
      %cst_12 = arith.constant 0.000000e+00 : f32
      %27 = vector.broadcast %cst_12 : f32 to vector<1x256xf32>
      %28 = arith.select %22, %9, %27 : vector<1x256xi1>, vector<1x256xf32>
      %cst_13 = arith.constant 0.000000e+00 : f32
      %29 = vector.broadcast %cst_13 : f32 to vector<1x256xf32>
      %30 = arith.select %22, %11, %29 : vector<1x256xi1>, vector<1x256xf32>
      %31 = tpu.concatenate %28, %30 in 0 : vector<1x256xf32>, vector<1x256xf32> -> vector<2x256xf32>
      %c0_14 = arith.constant 0 : index
      %c0_15 = arith.constant 0 : index
      %c0_16 = arith.constant 0 : index
      %c0_17 = arith.constant 0 : index
      %32 = vector.load %arg5[%c0_14, %c0_15, %c0_16, %c0_17] : memref<1x1x4x2xf32, #tpu.memory_space<vmem>>, vector<1x1x4x2xf32>
      %cst_18 = arith.constant dense<0.000000e+00> : vector<4x2xf32>
      %33 = tpu.matmul %26, %31, %cst_18 {dimension_numbers = #tpu.dot_dimension_numbers<[1], [1], [0], [0], [0, 0, 1, 0], [], []>} : vector<4x256xf32>, vector<2x256xf32>, vector<4x2xf32> -> vector<4x2xf32>
      %34 = vector.shape_cast %33 : vector<4x2xf32> to vector<1x1x4x2xf32>
      %35 = arith.addf %32, %34 : vector<1x1x4x2xf32>
      %c0_19 = arith.constant 0 : index
      %c0_20 = arith.constant 0 : index
      %c0_21 = arith.constant 0 : index
      %c0_22 = arith.constant 0 : index
      %36 = vector.load %arg5[%c0_19, %c0_20, %c0_21, %c0_22] : memref<1x1x4x2xf32, #tpu.memory_space<vmem>>, vector<1x1x4x2xf32>
      tpu.vector_store %arg5[%c0_19, %c0_20, %c0_21, %c0_22], %35 {strides = array<i32>} : memref<1x1x4x2xf32, #tpu.memory_space<vmem>>, vector<1x1x4x2xf32>,
      %c0_23 = arith.constant 0 : index
      %c0_24 = arith.constant 0 : index
      %c0_25 = arith.constant 0 : index
      %c0_26 = arith.constant 0 : index
      %37 = vector.load %arg6[%c0_23, %c0_24, %c0_25, %c0_26] : memref<1x1x1x2xf32, #tpu.memory_space<vmem>>, vector<1x1x1x2xf32>
      %cst_27 = arith.constant dense<0.000000e+00> : vector<1xf32>
      %38 = vector.multi_reduction <add>, %28, %cst_27 [1] : vector<1x256xf32> to vector<1xf32>
      %39 = vector.shape_cast %38 : vector<1xf32> to vector<1x1xf32>
      %cst_28 = arith.constant dense<0.000000e+00> : vector<1xf32>
      %40 = vector.multi_reduction <add>, %30, %cst_28 [1] : vector<1x256xf32> to vector<1xf32>
      %41 = vector.shape_cast %40 : vector<1xf32> to vector<1x1xf32>
      %42 = tpu.concatenate %39, %41 in 1 : vector<1x1xf32>, vector<1x1xf32> -> vector<1x2xf32>
      %43 = vector.shape_cast %42 : vector<1x2xf32> to vector<1x1x1x2xf32>
      %44 = arith.addf %37, %43 : vector<1x1x1x2xf32>
      %c0_29 = arith.constant 0 : index
      %c0_30 = arith.constant 0 : index
      %c0_31 = arith.constant 0 : index
      %c0_32 = arith.constant 0 : index
      %45 = vector.load %arg6[%c0_29, %c0_30, %c0_31, %c0_32] : memref<1x1x1x2xf32, #tpu.memory_space<vmem>>, vector<1x1x1x2xf32>
      tpu.vector_store %arg6[%c0_29, %c0_30, %c0_31, %c0_32], %44 {strides = array<i32>} : memref<1x1x1x2xf32, #tpu.memory_space<vmem>>, vector<1x1x1x2xf32>,
    } else {
    }
    return
  }
  func.func @transform_0(%arg0: i32, %arg1: i32, %arg2: i32) -> (i32, i32, i32) {
    %c1_i32 = arith.constant 1 : i32
    %0 = arith.muli %arg1, %c1_i32 : i32
    %1 = arith.addi %0, %arg2 : i32
    %c0_i32 = arith.constant 0 : i32
    %2 = arith.minsi %1, %c0_i32 : i32
    %c0_i32_0 = arith.constant 0 : i32
    %c0_i32_1 = arith.constant 0 : i32
    return %arg0, %c0_i32_0, %2 : i32, i32, i32
  }
  func.func @transform_1(%arg0: i32, %arg1: i32, %arg2: i32) -> (i32, i32, i32) {
    %c1_i32 = arith.constant 1 : i32
    %0 = arith.muli %arg1, %c1_i32 : i32
    %1 = arith.addi %0, %arg2 : i32
    %c0_i32 = arith.constant 0 : i32
    %2 = arith.minsi %1, %c0_i32 : i32
    %c0_i32_0 = arith.constant 0 : i32
    %c0_i32_1 = arith.constant 0 : i32
    return %arg0, %c0_i32_0, %2 : i32, i32, i32
  }
  func.func @transform_2(%arg0: i32, %arg1: i32, %arg2: i32) -> (i32, i32, i32, i32) {
    %c0_i32 = arith.constant 0 : i32
    %c0_i32_0 = arith.constant 0 : i32
    %c0_i32_1 = arith.constant 0 : i32
    return %arg0, %arg1, %c0_i32, %c0_i32_0 : i32, i32, i32, i32
  }
  func.func @transform_3(%arg0: i32, %arg1: i32, %arg2: i32) -> (i32, i32, i32, i32) {
    %c0_i32 = arith.constant 0 : i32
    %c0_i32_0 = arith.constant 0 : i32
    %c0_i32_1 = arith.constant 0 : i32
    return %arg0, %arg1, %c0_i32, %c0_i32_0 : i32, i32, i32, i32
  }
}

module attributes {stable_mosaic.version = 11 : i64} {
  func.func @_proto_softmax_kernel(%arg0: i32, %arg1: i32, %arg2: memref<1x2x4xf32, #tpu.memory_space<vmem>>, %arg3: memref<1x2x1xf32, #tpu.memory_space<vmem>>, %arg4: memref<1x4x256xf32, #tpu.memory_space<vmem>>, %arg5: memref<1x2x256xf32, #tpu.memory_space<vmem>>) attributes {dimension_semantics = [#tpu.dimension_semantics<parallel>, #tpu.dimension_semantics<parallel>], iteration_bounds = array<i64: 2, 1>, scalar_prefetch = 0 : i64, scratch_operands = 0 : i64, tpu.core_type = #tpu.core_type<tc>, window_params = [{transform_indices = @transform_0, window_bounds = array<i64: 1, 2, 4>}, {transform_indices = @transform_1, window_bounds = array<i64: 1, 2, 1>}, {transform_indices = @transform_2, window_bounds = array<i64: 1, 4, 256>}, {transform_indices = @transform_3, window_bounds = array<i64: 1, 2, 256>}]} {
    %c0 = arith.constant 0 : index
    %c0_0 = arith.constant 0 : index
    %c0_1 = arith.constant 0 : index
    %0 = vector.load %arg4[%c0, %c0_0, %c0_1] : memref<1x4x256xf32, #tpu.memory_space<vmem>>, vector<1x4x256xf32>
    %1 = vector.shape_cast %0 : vector<1x4x256xf32> to vector<4x256xf32>
    %c0_2 = arith.constant 0 : index
    %c0_3 = arith.constant 0 : index
    %c0_4 = arith.constant 0 : index
    %2 = vector.load %arg2[%c0_2, %c0_3, %c0_4] : memref<1x2x4xf32, #tpu.memory_space<vmem>>, vector<1x2x4xf32>
    %3 = vector.shape_cast %2 : vector<1x2x4xf32> to vector<2x4xf32>
    %c0_5 = arith.constant 0 : index
    %c0_6 = arith.constant 0 : index
    %c0_7 = arith.constant 0 : index
    %4 = vector.load %arg3[%c0_5, %c0_6, %c0_7] : memref<1x2x1xf32, #tpu.memory_space<vmem>>, vector<1x2x1xf32>
    %5 = vector.shape_cast %4 : vector<1x2x1xf32> to vector<2x1xf32>
    %cst = arith.constant dense<0.000000e+00> : vector<2x256xf32>
    %6 = tpu.matmul %3, %1, %cst {dimension_numbers = #tpu.dot_dimension_numbers<[1], [0], [0], [1], [0, 0, 1, 1], [], []>} : vector<2x4xf32>, vector<4x256xf32>, vector<2x256xf32> -> vector<2x256xf32>
    %7 = vector.broadcast %5 : vector<2x1xf32> to vector<2x256xf32>
    %8 = arith.addf %6, %7 : vector<2x256xf32>
    %9 = vector.extract_strided_slice %8 {offsets = [1, 0], sizes = [1, 256], strides = [1, 1]} : vector<2x256xf32> to vector<1x256xf32>
    %10 = vector.extract_strided_slice %8 {offsets = [0, 0], sizes = [1, 256], strides = [1, 1]} : vector<2x256xf32> to vector<1x256xf32>
    %11 = arith.subf %9, %10 : vector<1x256xf32>
    %cst_8 = arith.constant 0.000000e+00 : f32
    %12 = vector.broadcast %cst_8 : f32 to vector<1x256xf32>
    %13 = arith.subf %12, %11 : vector<1x256xf32>
    %14 = math.exp %13 : vector<1x256xf32>
    %cst_9 = arith.constant 1.000000e+00 : f32
    %15 = vector.broadcast %cst_9 : f32 to vector<1x256xf32>
    %16 = arith.addf %15, %14 : vector<1x256xf32>
    %cst_10 = arith.constant 1.000000e+00 : f32
    %17 = vector.broadcast %cst_10 : f32 to vector<1x256xf32>
    %18 = arith.divf %17, %16 : vector<1x256xf32>
    %cst_11 = arith.constant 1.000000e+00 : f32
    %19 = vector.broadcast %cst_11 : f32 to vector<1x256xf32>
    %20 = arith.subf %19, %18 : vector<1x256xf32>
    %21 = tpu.concatenate %20, %18 in 0 : vector<1x256xf32>, vector<1x256xf32> -> vector<2x256xf32>
    %c0_12 = arith.constant 0 : index
    %c0_13 = arith.constant 0 : index
    %c0_14 = arith.constant 0 : index
    %22 = vector.load %arg5[%c0_12, %c0_13, %c0_14] : memref<1x2x256xf32, #tpu.memory_space<vmem>>, vector<1x2x256xf32>
    %23 = vector.shape_cast %22 : vector<1x2x256xf32> to vector<2x256xf32>
    %24 = vector.shape_cast %21 : vector<2x256xf32> to vector<1x2x256xf32>
    tpu.vector_store %arg5[%c0_12, %c0_13, %c0_14], %24 {strides = array<i32>} : memref<1x2x256xf32, #tpu.memory_space<vmem>>, vector<1x2x256xf32>,
    return
  }
  func.func @transform_0(%arg0: i32, %arg1: i32) -> (i32, i32, i32) {
    %c0_i32 = arith.constant 0 : i32
    %c0_i32_0 = arith.constant 0 : i32
    %c0_i32_1 = arith.constant 0 : i32
    return %arg0, %c0_i32, %c0_i32_0 : i32, i32, i32
  }
  func.func @transform_1(%arg0: i32, %arg1: i32) -> (i32, i32, i32) {
    %c0_i32 = arith.constant 0 : i32
    %c0_i32_0 = arith.constant 0 : i32
    %c0_i32_1 = arith.constant 0 : i32
    return %arg0, %c0_i32, %c0_i32_0 : i32, i32, i32
  }
  func.func @transform_2(%arg0: i32, %arg1: i32) -> (i32, i32, i32) {
    %c0_i32 = arith.constant 0 : i32
    %c0_i32_0 = arith.constant 0 : i32
    return %arg0, %c0_i32, %arg1 : i32, i32, i32
  }
  func.func @transform_3(%arg0: i32, %arg1: i32) -> (i32, i32, i32) {
    %c0_i32 = arith.constant 0 : i32
    %c0_i32_0 = arith.constant 0 : i32
    return %arg0, %c0_i32, %arg1 : i32, i32, i32
  }
}

</mosaic_0001>

<llo_original>
// kernel: protoseg_forward.2
$region0: #{protoseg_forward.2}
  #allocation0 [shape = 'u32[]', space=smem, size = 0x4, offset = 0x4, fixed_abs, tag = 'smem constant byte address 0x4 - core index']
  #allocation1 [shape = 'u32[144,128]{1,0:T(1,128)}', space=vmem, size = 0x12000, scoped, tag = 'internal scratch']
  %s0 = inlined_call_operand.vmem [shape: f32[2,4,256], index: 0, kind: input, shape index: {}]
  %s1 = inlined_call_operand.vmem [shape: f32[2,1,256], index: 1, kind: input, shape index: {}]
  %s2 = inlined_call_operand.vmem [shape: f32[2,1,4,2], index: 2, kind: output, shape index: {0}]
  %s3 = inlined_call_operand.vmem [shape: f32[2,1,1,2], index: 3, kind: output, shape index: {1}]
  %4 = xla_tuple %s2, %s3
  %s5 = sld [smem:[#allocation0]]
  $region61: #{protoseg_forward.2} parent=0
    _
  %s7 = ssub.s32 1, %s5
  %s8 = scalar_select 0, %s7, %s5
  loop: start=0, step=1, limit=4
  $region2: #{protoseg_forward.2} parent=0 // loop_pre_header
    _
  $region3: #{protoseg_forward.2} parent=0 // loop_header
    %s10 = sphi 0, %s14
    %p11 = scmp.ge.s32.totalorder %s10, 4
    %s17 = sphi 0, %s36
    %s18 = sphi 0, %s32
    %s19 = sphi 0, %s28
    %s20 = sphi 0, %s17
    %s21 = sphi 0, %s18
    %s22 = sphi 0, %s19
    %s23 = sphi 0, %s20
    %s24 = sphi 0, %s21
    %s25 = sphi 0, %s22
    %s47 = sphi 0, %s49
    %s50 = sphi 0, %s47
    %s51 = sphi 0, %s50
    %s67 = sphi 0, %s51
    %s81 = sphi 0, %s83
    %s84 = sphi 0, %s81
    %s85 = sphi 0, %s84
    %s101 = sphi 0, %s85
    %s109 = sphi 0, %s111
    %s112 = sphi 0, %s109
    %s113 = sphi 0, %s112
    %s129 = sphi 0, %s113
    %s137 = sphi 0, %s139
    %s140 = sphi 0, %s137
    %s141 = sphi 0, %s140
    %s157 = sphi 0, %s141
  $region4: #{protoseg_forward.2} parent=0 // loop_header_branch
    %13 = sbr.rel (%p11) target = $region8
  $region5: #{protoseg_forward.2} parent=0 // loop_body
    %s15 = ssub.s32 %s10, 1
    %s16 = ssub.s32 %s10, 2
    %s26 = sadd.s32 1, %s19
    %p27 = scmp.ge.s32.totalorder %s26, 1
    %s28 = scalar_select %p27, 0, %s26
    %s29 = sadd.s32 1, %s18
    %s30 = scalar_select %p27, %s29, %s18
    %p31 = scmp.ge.s32.totalorder %s30, 1
    %s32 = scalar_select %p31, 0, %s30
    %s33 = sadd.s32 1, %s17
    %s34 = scalar_select %p31, %s33, %s17
    %p35 = scmp.ge.s32.totalorder %s34, 2
    %s36 = scalar_select %p35, 0, %s34
    %s37 = sadd.s32 %s18, %s19
    %p38 = scmp.lt.s32.totalorder %s37, 0
    %s39 = scalar_select %p38, %s37, 0
    %s40 = sadd.s32 %s32, %s28
    %p41 = scmp.lt.s32.totalorder %s40, 0
    %s42 = scalar_select %p41, %s40, 0
    %s43 = ssub.s32 %s17, %s36
    %s44 = ssub.s32 %s39, %s42
    %s45 = sor.u32 %s43, %s44
    %p46 = scmp.eq.s32.totalorder %s45, 0
    %s48 = sadd.s32 %s47, 1
    %s49 = scalar_select %p46, %s47, %s48
    %p52 = pneg %p46
    %p53 = scmp.eq.s32.totalorder %s10, 1
    %p54 = por %p52, %p53
    %p55 = scmp.ne.s32.totalorder %s47, %s50
    %p56 = scmp.eq.s32.totalorder %s10, 0
    %p57 = por %p55, %p56
    %p58 = scmp.ne.s32.totalorder %s47, %s50
    %p59 = scmp.eq.s32.totalorder %s15, 1
    %p60 = por %p58, %p59
    %p61 = scmp.ne.s32.totalorder %s50, %s51
    %p62 = scmp.eq.s32.totalorder %s15, 0
    %p63 = por %p61, %p62
    %p64 = scmp.ne.s32.totalorder %s50, %s51
    %p65 = scmp.eq.s32.totalorder %s16, 1
    %p66 = por %p64, %p65
    %p68 = scmp.ne.s32.totalorder %s51, %s67
    %p69 = scmp.eq.s32.totalorder %s16, 0
    %p70 = por %p68, %p69
    %s71 = sadd.s32 %s18, %s19
    %p72 = scmp.lt.s32.totalorder %s71, 0
    %s73 = scalar_select %p72, %s71, 0
    %s74 = sadd.s32 %s32, %s28
    %p75 = scmp.lt.s32.totalorder %s74, 0
    %s76 = scalar_select %p75, %s74, 0
    %s77 = ssub.s32 %s17, %s36
    %s78 = ssub.s32 %s73, %s76
    %s79 = sor.u32 %s77, %s78
    %p80 = scmp.eq.s32.totalorder %s79, 0
    %s82 = sadd.s32 %s81, 1
    %s83 = scalar_select %p80, %s81, %s82
    %p86 = pneg %p80
    %p87 = scmp.eq.s32.totalorder %s10, 1
    %p88 = por %p86, %p87
    %p89 = scmp.ne.s32.totalorder %s81, %s84
    %p90 = scmp.eq.s32.totalorder %s10, 0
    %p91 = por %p89, %p90
    %p92 = scmp.ne.s32.totalorder %s81, %s84
    %p93 = scmp.eq.s32.totalorder %s15, 1
    %p94 = por %p92, %p93
    %p95 = scmp.ne.s32.totalorder %s84, %s85
    %p96 = scmp.eq.s32.totalorder %s15, 0
    %p97 = por %p95, %p96
    %p98 = scmp.ne.s32.totalorder %s84, %s85
    %p99 = scmp.eq.s32.totalorder %s16, 1
    %p100 = por %p98, %p99
    %p102 = scmp.ne.s32.totalorder %s85, %s101
    %p103 = scmp.eq.s32.totalorder %s16, 0
    %p104 = por %p102, %p103
    %s105 = ssub.s32 %s17, %s36
    %s106 = ssub.s32 %s18, %s32
    %s107 = sor.u32 %s105, %s106
    %p108 = scmp.eq.s32.totalorder %s107, 0
    %s110 = sadd.s32 %s109, 1
    %s111 = scalar_select %p108, %s109, %s110
    %p114 = pneg %p108
    %p115 = scmp.eq.s32.totalorder %s10, 1
    %p116 = por %p114, %p115
    %p117 = scmp.ne.s32.totalorder %s109, %s112
    %p118 = scmp.eq.s32.totalorder %s10, 0
    %p119 = por %p117, %p118
    %p120 = scmp.ne.s32.totalorder %s109, %s112
    %p121 = scmp.eq.s32.totalorder %s15, 1
    %p122 = por %p120, %p121
    %p123 = scmp.ne.s32.totalorder %s112, %s113
    %p124 = scmp.eq.s32.totalorder %s15, 0
    %p125 = por %p123, %p124
    %p126 = scmp.ne.s32.totalorder %s112, %s113
    %p127 = scmp.eq.s32.totalorder %s16, 1
    %p128 = por %p126, %p127
    %p130 = scmp.ne.s32.totalorder %s113, %s129
    %p131 = scmp.eq.s32.totalorder %s16, 0
    %p132 = por %p130, %p131
    %s133 = ssub.s32 %s17, %s36
    %s134 = ssub.s32 %s18, %s32
    %s135 = sor.u32 %s133, %s134
    %p136 = scmp.eq.s32.totalorder %s135, 0
    %s138 = sadd.s32 %s137, 1
    %s139 = scalar_select %p136, %s137, %s138
    %p142 = pneg %p136
    %p143 = scmp.eq.s32.totalorder %s10, 1
    %p144 = por %p142, %p143
    %p145 = scmp.ne.s32.totalorder %s137, %s140
    %p146 = scmp.eq.s32.totalorder %s10, 0
    %p147 = por %p145, %p146
    %p148 = scmp.ne.s32.totalorder %s137, %s140
    %p149 = scmp.eq.s32.totalorder %s15, 1
    %p150 = por %p148, %p149
    %p151 = scmp.ne.s32.totalorder %s140, %s141
    %p152 = scmp.eq.s32.totalorder %s15, 0
    %p153 = por %p151, %p152
    %p154 = scmp.ne.s32.totalorder %s140, %s141
    %p155 = scmp.eq.s32.totalorder %s16, 1
    %p156 = por %p154, %p155
    %p158 = scmp.ne.s32.totalorder %s141, %s157
    %p159 = scmp.eq.s32.totalorder %s16, 0
    %p160 = por %p158, %p159
    %p161 = scmp.le.s32.totalorder 1, %s10
    %p162 = scmp.lt.s32.totalorder %s10, 3
    %p163 = pnand %p161, %p162
    %p164 = pneg %p163
    // Predicated region
    $region9: #{protoseg_forward.2} parent=5 // pred_check
      _
    $region10: #{protoseg_forward.2} parent=5 // pred_check_branch
      %166 = sbr.rel (%p163) target = $region12
    $region11: #{protoseg_forward.2} parent=5 // pred_region
      %s167 = ssub.s32 %s10, 1
    $region12: #{protoseg_forward.2} parent=5 // pred_fallthru
      _
    %p168 = scmp.lt.s32.totalorder %s10, 2
    // Predicated region
    $region13: #{protoseg_forward.2} parent=5 // pred_check
      %p169 = pneg %p168
    $region14: #{protoseg_forward.2} parent=5 // pred_check_branch
      %171 = sbr.rel (%p169) target = $region16
    $region15: #{protoseg_forward.2} parent=5 // pred_region
      // Predicated region
      $region17: #{protoseg_forward.2} parent=15 // pred_check
        %p172 = pneg %p57
      $region18: #{protoseg_forward.2} parent=15 // pred_check_branch
        %174 = sbr.rel (%p172) target = $region20
      $region19: #{protoseg_forward.2} parent=15 // pred_region
        %s175 = sadd.s32 %s18, %s19
        %p176 = scmp.lt.s32.totalorder %s175, 0
        %s177 = scalar_select %p176, %s175, 0
        %s178 = smul.u32 2, %s177
        %p179 = scmp.lt.s32.totalorder %s17, 1
        %s180 = scalar_select %p179, %s17, 1
        %p181 = scmp.lt.s32.totalorder %s178, 1
        %s182 = scalar_select %p181, %s178, 1
        %s183 = smul.addr %s180, 2
        %s184 = sadd.s32 %s182, %s183
        %s185 = smul.addr %s184, 4
        %s186 = scalar_lea.vmem %s0, %s185
        %s187 = sadd.s32 %s18, %s19
        %p188 = scmp.lt.s32.totalorder %s187, 0
        %s189 = scalar_select %p188, %s187, 0
        %s190 = smul.u32 2, %s189
      $region20: #{protoseg_forward.2} parent=15 // pred_fallthru
        _
      // Predicated region
      $region21: #{protoseg_forward.2} parent=15 // pred_check
        %p191 = pneg %p91
      $region22: #{protoseg_forward.2} parent=15 // pred_check_branch
        %193 = sbr.rel (%p191) target = $region24
      $region23: #{protoseg_forward.2} parent=15 // pred_region
        %s194 = sadd.s32 %s18, %s19
        %p195 = scmp.lt.s32.totalorder %s194, 0
        %s196 = scalar_select %p195, %s194, 0
        %s197 = smul.u32 2, %s196
        %p198 = scmp.lt.s32.totalorder %s17, 1
        %s199 = scalar_select %p198, %s17, 1
        %p200 = scmp.lt.s32.totalorder %s197, 1
        %s201 = scalar_select %p200, %s197, 1
        %s202 = smul.addr %s199, 2
        %s203 = sadd.s32 %s201, %s202
        %s204 = scalar_lea.vmem %s1, %s203
        %s205 = sadd.s32 %s18, %s19
        %p206 = scmp.lt.s32.totalorder %s205, 0
        %s207 = scalar_select %p206, %s205, 0
        %s208 = smul.u32 2, %s207
      $region24: #{protoseg_forward.2} parent=15 // pred_fallthru
        _
    $region16: #{protoseg_forward.2} parent=5 // pred_fallthru
      _
    %p209 = scmp.le.s32.totalorder 1, %s10
    %p210 = scmp.lt.s32.totalorder %s10, 3
    %p211 = pnand %p209, %p210
    %p212 = pneg %p211
    // Predicated region
    $region25: #{protoseg_forward.2} parent=5 // pred_check
      _
    $region26: #{protoseg_forward.2} parent=5 // pred_check_branch
      %214 = sbr.rel (%p211) target = $region28
    $region27: #{protoseg_forward.2} parent=5 // pred_region
      %s215 = ssub.s32 %s10, 1
      %s216 = sadd.s32 %s21, %s22
      %p217 = scmp.lt.s32.totalorder %s216, 0
      %s218 = scalar_select %p217, %s216, 0
      %s219 = smul.u32 2, %s218
      %p220 = scmp.lt.s32.totalorder %s20, 1
      %s221 = scalar_select %p220, %s20, 1
      %p222 = scmp.lt.s32.totalorder %s219, 1
      %s223 = scalar_select %p222, %s219, 1
      %s224 = smul.addr %s221, 2
      %s225 = sadd.s32 %s223, %s224
      %s226 = smul.addr %s225, 4
      %s227 = scalar_lea.vmem %s0, %s226
      %p228 = pneg %p63
      %p229 = pneg %p60
      %s230 = sadd.s32 %s21, %s22
      %p231 = scmp.lt.s32.totalorder %s230, 0
      %s232 = scalar_select %p231, %s230, 0
      %s233 = smul.u32 2, %s232
      %p234 = scmp.lt.s32.totalorder %s20, 1
      %s235 = scalar_select %p234, %s20, 1
      %p236 = scmp.lt.s32.totalorder %s233, 1
      %s237 = scalar_select %p236, %s233, 1
      %s238 = smul.addr %s235, 2
      %s239 = sadd.s32 %s237, %s238
      %s240 = scalar_lea.vmem %s1, %s239
      %p241 = pneg %p97
      %p242 = pneg %p94
      %p243 = pneg %p125
      %p244 = pneg %p122
      %p245 = scmp.lt.s32.totalorder %s20, 1
      %s246 = scalar_select %p245, %s20, 1
      %p247 = scmp.lt.s32.totalorder %s21, 0
      %s248 = scalar_select %p247, %s21, 0
      %s249 = sadd.s32 %s248, %s246
      %s250 = smul.addr %s249, 4
      %s251 = scalar_lea.vmem %s2, %s250
      %p252 = pneg %p153
      %p253 = pneg %p150
      %p254 = scmp.lt.s32.totalorder %s20, 1
      %s255 = scalar_select %p254, %s20, 1
      %p256 = scmp.lt.s32.totalorder %s21, 0
      %s257 = scalar_select %p256, %s21, 0
      %s258 = sadd.s32 %s257, %s255
      %s259 = scalar_lea.vmem %s3, %s258
      %s260 = sadd.s32 %s21, %s22
      %p261 = scmp.lt.s32.totalorder %s260, 0
      %s262 = scalar_select %p261, %s260, 0
      %s263 = smul.u32 2, %s262
      %p264 = scmp.lt.s32.totalorder %s20, 1
      %s265 = scalar_select %p264, %s20, 1
      %p266 = scmp.lt.s32.totalorder %s263, 1
      %s267 = scalar_select %p266, %s263, 1
      %s268 = smul.addr %s265, 2
      %s269 = sadd.s32 %s267, %s268
      %s270 = smul.addr %s269, 4
      %s271 = scalar_lea.vmem %s0, %s270
      %s272 = sadd.s32 %s21, %s22
      %p273 = scmp.lt.s32.totalorder %s272, 0
      %s274 = scalar_select %p273, %s272, 0
      %s275 = smul.u32 2, %s274
      %s276 = sadd.s32 %s21, %s22
      %p277 = scmp.lt.s32.totalorder %s276, 0
      %s278 = scalar_select %p277, %s276, 0
      %s279 = smul.u32 2, %s278
      %p280 = scmp.lt.s32.totalorder %s20, 1
      %s281 = scalar_select %p280, %s20, 1
      %p282 = scmp.lt.s32.totalorder %s279, 1
      %s283 = scalar_select %p282, %s279, 1
      %s284 = smul.addr %s281, 2
      %s285 = sadd.s32 %s283, %s284
      %s286 = scalar_lea.vmem %s1, %s285
      %s287 = sadd.s32 %s21, %s22
      %p288 = scmp.lt.s32.totalorder %s287, 0
      %s289 = scalar_select %p288, %s287, 0
      %s290 = smul.u32 2, %s289
      %p291 = scmp.lt.s32.totalorder %s20, 1
      %s292 = scalar_select %p291, %s20, 1
      %p293 = scmp.lt.s32.totalorder %s21, 0
      %s294 = scalar_select %p293, %s21, 0
      %s295 = sadd.s32 %s294, %s292
      %s296 = smul.addr %s295, 4
      %s297 = scalar_lea.vmem %s2, %s296
      %p298 = scmp.lt.s32.totalorder %s20, 1
      %s299 = scalar_select %p298, %s20, 1
      %p300 = scmp.lt.s32.totalorder %s21, 0
      %s301 = scalar_select %p300, %s21, 0
      %s302 = sadd.s32 %s301, %s299
      %s303 = scalar_lea.vmem %s3, %s302
      %p304 = scmp.eq.s32.totalorder %s22, 0
      // Predicated region
      $region29: #{protoseg_forward.2} parent=27 // pred_check
        %p305 = pneg %p304
      $region30: #{protoseg_forward.2} parent=27 // pred_check_branch
        %307 = sbr.rel (%p305) target = $region32
      $region31: #{protoseg_forward.2} parent=27 // pred_region
        %vm308 = vcmask 11264
        %309 = vst.msk [vmem:[%s297] sm:$0xf] %vm308, 0.0
        %vm310 = vcmask 8192
        %311 = vst.msk [vmem:[%s303] sm:$0x1] %vm310, 0.0
      $region32: #{protoseg_forward.2} parent=27 // pred_fallthru
        _
      %s312 = sadd.s32 %s21, %s22
      %s313 = smul.u32 %s312, 256
      %v314 = vld [vmem:[%s271] sm:$0xff]
      %v315 = vld [vmem:[%s286] sm:$0x3]
      %v316 = vsub.f32 1.0, %v315
      %s317 = sadd.s32 %s313, 256
      %p318 = scmp.le.s32.totalorder %s317, 256
      // Predicated region
      $region33: #{protoseg_forward.2} parent=27 // pred_check
        %p319 = pneg %p318
      $region34: #{protoseg_forward.2} parent=27 // pred_check_branch
        %321 = sbr.rel (%p319) target = $region36
      $region35: #{protoseg_forward.2} parent=27 // pred_region
        %v323 = vlaneseq
        %v324 = vshrl.u32 %v323, 7
        %v325 = vsub.s32 0, %v324
        %v326 = vrot.slane %v315, %v325
        %v327 = vlaneseq
        %v328 = vshrl.u32 %v327, 7
        %v329 = vsub.s32 1, %v328
        %v330 = vrot.slane %v315, %v329
        %v334 = vlaneseq
        %v335 = vshrl.u32 %v334, 7
        %v336 = vsub.s32 0, %v335
        %v337 = vrot.slane %v316, %v336
        %v338 = vlaneseq
        %v339 = vshrl.u32 %v338, 7
        %v340 = vsub.s32 1, %v339
        %v341 = vrot.slane %v316, %v340
        %vm344 = vcmask 1040384
        %v345 = vsel %vm344, %v326, %v337
        %v346 = vsel %vm344, %v330, %v341
        %v347 = vld [vmem:[%s297] sm:$0xf]
        %v349 = vcombine.high %v314, %v314
        %351 = vmatprep.subr.mxu0 0.0
        %352 = vmatpush1.xpose.msra.mxu0 0.0
        %353 = vmatprep.subr.mxu0 0.0
        %354 = vmatpush1.xpose.msra.mxu0 0.0
        %355 = vmatprep.subr.mxu0 0.0
        %356 = vmatpush1.xpose.msra.mxu0 0.0
        %357 = vmatprep.subr.mxu0 0.0
        %358 = vmatpush1.xpose.msra.mxu0 0.0
        %359 = vmatprep.subr.mxu0 0.0
        %360 = vmatpush1.xpose.msra.mxu0 0.0
        %361 = vmatprep.subr.mxu0 0.0
        %362 = vmatpush1.xpose.msra.mxu0 0.0
        %363 = vmatprep.subr.mxu0 0.0
        %364 = vmatpush1.xpose.msra.mxu0 0.0
        %365 = vmatprep.subr.mxu0 0.0
        %366 = vmatpush1.xpose.msra.mxu0 0.0
        %367 = vmatprep.subr.mxu0 0.0
        %368 = vmatpush1.xpose.msra.mxu0 0.0
        %369 = vmatprep.subr.mxu0 0.0
        %370 = vmatpush1.xpose.msra.mxu0 0.0
        %371 = vmatprep.subr.mxu0 0.0
        %372 = vmatpush1.xpose.msra.mxu0 0.0
        %373 = vmatprep.subr.mxu0 0.0
        %374 = vmatpush1.xpose.msra.mxu0 0.0
        %375 = vmatprep.subr.mxu0 0.0
        %376 = vmatpush1.xpose.msra.mxu0 0.0
        %377 = vmatprep.subr.mxu0 0.0
        %378 = vmatpush1.xpose.msra.mxu0 0.0
        %379 = vmatprep.subr.mxu0 0.0
        %380 = vmatpush1.xpose.msra.mxu0 0.0
        %381 = vmatprep.subr.mxu0 %v346
        %382 = vmatpush1.xpose.msra.mxu0 %v345
        %383 = vmatprep.subr.mxu0 0.0
        %384 = vmatpush2.xpose.msra.mxu0 0.0
        %385 = vmatprep.subr.mxu0 0.0
        %386 = vmatpush2.xpose.msra.mxu0 0.0
        %387 = vmatprep.subr.mxu0 0.0
        %388 = vmatpush2.xpose.msra.mxu0 0.0
        %389 = vmatprep.subr.mxu0 0.0
        %390 = vmatpush2.xpose.msra.mxu0 0.0
        %391 = vmatprep.subr.mxu0 0.0
        %392 = vmatpush2.xpose.msra.mxu0 0.0
        %393 = vmatprep.subr.mxu0 0.0
        %394 = vmatpush2.xpose.msra.mxu0 0.0
        %395 = vmatprep.subr.mxu0 0.0
        %396 = vmatpush2.xpose.msra.mxu0 0.0
        %397 = vmatprep.subr.mxu0 0.0
        %398 = vmatpush2.xpose.msra.mxu0 0.0
        %399 = vmatprep.subr.mxu0 0.0
        %400 = vmatpush2.xpose.msra.mxu0 0.0
        %401 = vmatprep.subr.mxu0 0.0
        %402 = vmatpush2.xpose.msra.mxu0 0.0
        %403 = vmatprep.subr.mxu0 0.0
        %404 = vmatpush2.xpose.msra.mxu0 0.0
        %405 = vmatprep.subr.mxu0 0.0
        %406 = vmatpush2.xpose.msra.mxu0 0.0
        %407 = vmatprep.subr.mxu0 0.0
        %408 = vmatpush2.xpose.msra.mxu0 0.0
        %409 = vmatprep.subr.mxu0 0.0
        %410 = vmatpush2.xpose.msra.mxu0 0.0
        %411 = vmatprep.subr.mxu0 0.0
        %412 = vmatpush2.xpose.msra.mxu0 0.0
        %413 = vmatprep.subr.mxu0 0.0
        %414 = vmatpush2.xpose.msra.mxu0 0.0
        %415 = vmatprep.mubr.f32.mxu0 %v349
        %416 = vmatmul.mubr.f32.gmra.mxu0 %v314
        %v417 = vpop.f32.mrf.mxu0
        %v418 = vadd.f32 0.0, %v417
        %v419 = vpop.f32.mrf.mxu0
        %420 = vdwg.mxu0
        %v421 = vadd.f32 %v347, %v418
        %vm422 = vcmask 11264
        %423 = vst.msk [vmem:[%s297] sm:$0xf] %vm422, %v421
        %v424 = vld [vmem:[%s303] sm:$0x1]
        %v425 = vsel %vm344, %v326, 0.0
        %v426 = vsel %vm344, %v330, 0.0
        %v427 = vadd.f32 %v425, %v426
        %428 = vadd.xlane.f32.xlu0 %v427
        %v429 = vpop.xlane.xlu0 %428
        %v430 = vsel %vm344, %v337, 0.0
        %v431 = vsel %vm344, %v341, 0.0
        %v432 = vadd.f32 %v430, %v431
        %433 = vadd.xlane.f32.xlu0 %v432
        %v434 = vpop.xlane.xlu0 %433
        %vm435 = vcmask 7168
        %v436 = vsel %vm435, %v429, %v434
        %v437 = vadd.f32 %v424, %v436
        %vm438 = vcmask 8192
        %439 = vst.msk [vmem:[%s303] sm:$0x1] %vm438, %v437
      $region36: #{protoseg_forward.2} parent=27 // pred_fallthru
        _
      %p440 = scmp.gt.s32.totalorder %s317, 256
      // Predicated region
      $region37: #{protoseg_forward.2} parent=27 // pred_check
        %p441 = pneg %p440
      $region38: #{protoseg_forward.2} parent=27 // pred_check_branch
        %443 = sbr.rel (%p441) target = $region40
      $region39: #{protoseg_forward.2} parent=27 // pred_region
        %v444 = vlaneseq
        %v445 = vand.u32 %v444, 127
        %v446 = vadd.s32 %v445, 128
        %s447 = ssub.s32 256, %s313
        %v448 = vstv %s447
        %vm449 = vcmp.lt.s32.totalorder %v445, %v448
        %vm450 = vcmp.lt.s32.totalorder %v446, %v448
        %v451 = vsel %vm449, 1, 0
        %v452 = vsel %vm450, 1, 0
        %vm453 = vcmp.eq.s32.totalorder %v451, 1
        %vm454 = vcmp.eq.s32.totalorder %v452, 1
        %v456 = vcombine.high %v314, %v314
        %v458 = vsel %vm453, %v314, 0.0
        %v459 = vsel %vm454, %v456, 0.0
        %v461 = vlaneseq
        %v462 = vshrl.u32 %v461, 7
        %v463 = vsub.s32 0, %v462
        %v464 = vrot.slane %v315, %v463
        %v465 = vlaneseq
        %v466 = vshrl.u32 %v465, 7
        %v467 = vsub.s32 1, %v466
        %v468 = vrot.slane %v315, %v467
        %v471 = vsel %vm449, %v464, 0.0
        %v472 = vsel %vm450, %v468, 0.0
        %v474 = vlaneseq
        %v475 = vshrl.u32 %v474, 7
        %v476 = vsub.s32 0, %v475
        %v477 = vrot.slane %v316, %v476
        %v478 = vlaneseq
        %v479 = vshrl.u32 %v478, 7
        %v480 = vsub.s32 1, %v479
        %v481 = vrot.slane %v316, %v480
        %v484 = vsel %vm449, %v477, 0.0
        %v485 = vsel %vm450, %v481, 0.0
        %v488 = vrot.slane %v484, 7
        %v489 = vrot.slane %v485, 7
        %vm492 = vcmask 1040384
        %v493 = vsel %vm492, %v471, %v488
        %v494 = vsel %vm492, %v472, %v489
        %v495 = vld [vmem:[%s297] sm:$0xf]
        %496 = vmatprep.subr.mxu0 0.0
        %497 = vmatpush1.xpose.msra.mxu0 0.0
        %498 = vmatprep.subr.mxu0 0.0
        %499 = vmatpush1.xpose.msra.mxu0 0.0
        %500 = vmatprep.subr.mxu0 0.0
        %501 = vmatpush1.xpose.msra.mxu0 0.0
        %502 = vmatprep.subr.mxu0 0.0
        %503 = vmatpush1.xpose.msra.mxu0 0.0
        %504 = vmatprep.subr.mxu0 0.0
        %505 = vmatpush1.xpose.msra.mxu0 0.0
        %506 = vmatprep.subr.mxu0 0.0
        %507 = vmatpush1.xpose.msra.mxu0 0.0
        %508 = vmatprep.subr.mxu0 0.0
        %509 = vmatpush1.xpose.msra.mxu0 0.0
        %510 = vmatprep.subr.mxu0 0.0
        %511 = vmatpush1.xpose.msra.mxu0 0.0
        %512 = vmatprep.subr.mxu0 0.0
        %513 = vmatpush1.xpose.msra.mxu0 0.0
        %514 = vmatprep.subr.mxu0 0.0
        %515 = vmatpush1.xpose.msra.mxu0 0.0
        %516 = vmatprep.subr.mxu0 0.0
        %517 = vmatpush1.xpose.msra.mxu0 0.0
        %518 = vmatprep.subr.mxu0 0.0
        %519 = vmatpush1.xpose.msra.mxu0 0.0
        %520 = vmatprep.subr.mxu0 0.0
        %521 = vmatpush1.xpose.msra.mxu0 0.0
        %522 = vmatprep.subr.mxu0 0.0
        %523 = vmatpush1.xpose.msra.mxu0 0.0
        %524 = vmatprep.subr.mxu0 0.0
        %525 = vmatpush1.xpose.msra.mxu0 0.0
        %526 = vmatprep.subr.mxu0 %v494
        %527 = vmatpush1.xpose.msra.mxu0 %v493
        %528 = vmatprep.subr.mxu0 0.0
        %529 = vmatpush2.xpose.msra.mxu0 0.0
        %530 = vmatprep.subr.mxu0 0.0
        %531 = vmatpush2.xpose.msra.mxu0 0.0
        %532 = vmatprep.subr.mxu0 0.0
        %533 = vmatpush2.xpose.msra.mxu0 0.0
        %534 = vmatprep.subr.mxu0 0.0
        %535 = vmatpush2.xpose.msra.mxu0 0.0
        %536 = vmatprep.subr.mxu0 0.0
        %537 = vmatpush2.xpose.msra.mxu0 0.0
        %538 = vmatprep.subr.mxu0 0.0
        %539 = vmatpush2.xpose.msra.mxu0 0.0
        %540 = vmatprep.subr.mxu0 0.0
        %541 = vmatpush2.xpose.msra.mxu0 0.0
        %542 = vmatprep.subr.mxu0 0.0
        %543 = vmatpush2.xpose.msra.mxu0 0.0
        %544 = vmatprep.subr.mxu0 0.0
        %545 = vmatpush2.xpose.msra.mxu0 0.0
        %546 = vmatprep.subr.mxu0 0.0
        %547 = vmatpush2.xpose.msra.mxu0 0.0
        %548 = vmatprep.subr.mxu0 0.0
        %549 = vmatpush2.xpose.msra.mxu0 0.0
        %550 = vmatprep.subr.mxu0 0.0
        %551 = vmatpush2.xpose.msra.mxu0 0.0
        %552 = vmatprep.subr.mxu0 0.0
        %553 = vmatpush2.xpose.msra.mxu0 0.0
        %554 = vmatprep.subr.mxu0 0.0
        %555 = vmatpush2.xpose.msra.mxu0 0.0
        %556 = vmatprep.subr.mxu0 0.0
        %557 = vmatpush2.xpose.msra.mxu0 0.0
        %558 = vmatprep.subr.mxu0 0.0
        %559 = vmatpush2.xpose.msra.mxu0 0.0
        %560 = vmatprep.mubr.f32.mxu0 %v459
        %561 = vmatmul.mubr.f32.gmra.mxu0 %v458
        %v562 = vpop.f32.mrf.mxu0
        %v563 = vadd.f32 0.0, %v562
        %v564 = vpop.f32.mrf.mxu0
        %565 = vdwg.mxu0
        %v566 = vadd.f32 %v495, %v563
        %vm567 = vcmask 11264
        %568 = vst.msk [vmem:[%s297] sm:$0xf] %vm567, %v566
        %v569 = vld [vmem:[%s303] sm:$0x1]
        %v570 = vsel %vm492, %v471, 0.0
        %v571 = vsel %vm492, %v472, 0.0
        %v572 = vadd.f32 %v570, %v571
        %573 = vadd.xlane.f32.xlu0 %v572
        %v574 = vpop.xlane.xlu0 %573
        %v575 = vsel %vm492, %v484, 0.0
        %v576 = vsel %vm492, %v485, 0.0
        %v577 = vadd.f32 %v575, %v576
        %578 = vadd.xlane.f32.xlu0 %v577
        %v579 = vpop.xlane.xlu0 %578
        %vm580 = vcmask 7168
        %v581 = vsel %vm580, %v574, %v579
        %v582 = vadd.f32 %v569, %v581
        %vm583 = vcmask 8192
        %584 = vst.msk [vmem:[%s303] sm:$0x1] %vm583, %v582
      $region40: #{protoseg_forward.2} parent=27 // pred_fallthru
        _
      %p585 = scmp.lt.s32.totalorder %s20, 1
      %s586 = scalar_select %p585, %s20, 1
      %p587 = scmp.lt.s32.totalorder %s21, 0
      %s588 = scalar_select %p587, %s21, 0
      %s589 = sadd.s32 %s588, %s586
      %s590 = smul.addr %s589, 4
      %s591 = scalar_lea.vmem %s2, %s590
      %p592 = scmp.lt.s32.totalorder %s20, 1
      %s593 = scalar_select %p592, %s20, 1
      %p594 = scmp.lt.s32.totalorder %s21, 0
      %s595 = scalar_select %p594, %s21, 0
      %s596 = sadd.s32 %s595, %s593
      %s597 = scalar_lea.vmem %s3, %s596
      // Predicated region
      $region41: #{protoseg_forward.2} parent=27 // pred_check
        %p598 = pneg %p122
      $region42: #{protoseg_forward.2} parent=27 // pred_check_branch
        %600 = sbr.rel (%p598) target = $region44
      $region43: #{protoseg_forward.2} parent=27 // pred_region
        _
      $region44: #{protoseg_forward.2} parent=27 // pred_fallthru
        _
      // Predicated region
      $region45: #{protoseg_forward.2} parent=27 // pred_check
        %p601 = pneg %p150
      $region46: #{protoseg_forward.2} parent=27 // pred_check_branch
        %603 = sbr.rel (%p601) target = $region48
      $region47: #{protoseg_forward.2} parent=27 // pred_region
        _
      $region48: #{protoseg_forward.2} parent=27 // pred_fallthru
        _
    $region28: #{protoseg_forward.2} parent=5 // pred_fallthru
      _
    %p604 = scmp.le.s32.totalorder 2, %s10
    // Predicated region
    $region49: #{protoseg_forward.2} parent=5 // pred_check
      %p605 = pneg %p604
    $region50: #{protoseg_forward.2} parent=5 // pred_check_branch
      %607 = sbr.rel (%p605) target = $region52
    $region51: #{protoseg_forward.2} parent=5 // pred_region
      %s608 = ssub.s32 %s10, 2
      // Predicated region
      $region53: #{protoseg_forward.2} parent=51 // pred_check
        %p609 = pneg %p128
      $region54: #{protoseg_forward.2} parent=51 // pred_check_branch
        %611 = sbr.rel (%p609) target = $region56
      $region55: #{protoseg_forward.2} parent=51 // pred_region
        %p612 = scmp.lt.s32.totalorder %s23, 1
        %s613 = scalar_select %p612, %s23, 1
        %p614 = scmp.lt.s32.totalorder %s24, 0
        %s615 = scalar_select %p614, %s24, 0
        %s616 = sadd.s32 %s615, %s613
        %s617 = smul.addr %s616, 4
        %s618 = scalar_lea.vmem %s2, %s617
      $region56: #{protoseg_forward.2} parent=51 // pred_fallthru
        _
      // Predicated region
      $region57: #{protoseg_forward.2} parent=51 // pred_check
        %p619 = pneg %p156
      $region58: #{protoseg_forward.2} parent=51 // pred_check_branch
        %621 = sbr.rel (%p619) target = $region60
      $region59: #{protoseg_forward.2} parent=51 // pred_region
        %p622 = scmp.lt.s32.totalorder %s23, 1
        %s623 = scalar_select %p622, %s23, 1
        %p624 = scmp.lt.s32.totalorder %s24, 0
        %s625 = scalar_select %p624, %s24, 0
        %s626 = sadd.s32 %s625, %s623
        %s627 = scalar_lea.vmem %s3, %s626
      $region60: #{protoseg_forward.2} parent=51 // pred_fallthru
        _
    $region52: #{protoseg_forward.2} parent=5 // pred_fallthru
      _
  $region6: #{protoseg_forward.2} parent=0 // loop_footer
    %s14 = sadd.s32 1, %s10
  $region7: #{protoseg_forward.2} parent=0 // loop_footer_branch
    %9 = sbr.rel target = $region3
  $region8: #{protoseg_forward.2} parent=0 // loop_exit
    _

// kernel: protoseg_forward.3
$region0: #{protoseg_forward.3}
  #allocation0 [shape = 'u32[]', space=smem, size = 0x4, offset = 0x4, fixed_abs, tag = 'smem constant byte address 0x4 - core index']
  #allocation1 [shape = 'u32[144,128]{1,0:T(1,128)}', space=vmem, size = 0x12000, scoped, tag = 'internal scratch']
  %s0 = inlined_call_operand.vmem [shape: f32[2,2,4], index: 0, kind: input, shape index: {}]
  %s1 = inlined_call_operand.vmem [shape: f32[2,2,1], index: 1, kind: input, shape index: {}]
  %s2 = inlined_call_operand.vmem [shape: f32[2,4,256], index: 2, kind: input, shape index: {}]
  %s3 = inlined_call_operand.vmem [shape: f32[2,2,256], index: 3, kind: output, shape index: {}]
  %s4 = sld [smem:[#allocation0]]
  $region45: #{protoseg_forward.3} parent=0
    _
  %s6 = ssub.s32 1, %s4
  %s7 = scalar_select 0, %s6, %s4
  loop: start=0, step=1, limit=4
  $region2: #{protoseg_forward.3} parent=0 // loop_pre_header
    _
  $region3: #{protoseg_forward.3} parent=0 // loop_header
    %s9 = sphi 0, %s13
    %p10 = scmp.ge.s32.totalorder %s9, 4
    %s16 = sphi 0, %s28
    %s17 = sphi 0, %s24
    %s18 = sphi 0, %s16
    %s19 = sphi 0, %s17
    %s20 = sphi 0, %s18
    %s21 = sphi 0, %s19
    %s31 = sphi 0, %s33
    %s34 = sphi 0, %s31
    %s35 = sphi 0, %s34
    %s51 = sphi 0, %s35
    %s57 = sphi 0, %s59
    %s60 = sphi 0, %s57
    %s61 = sphi 0, %s60
    %s77 = sphi 0, %s61
    %s85 = sphi 0, %s87
    %s88 = sphi 0, %s85
    %s89 = sphi 0, %s88
    %s105 = sphi 0, %s89
    %s113 = sphi 0, %s115
    %s116 = sphi 0, %s113
    %s117 = sphi 0, %s116
    %s133 = sphi 0, %s117
  $region4: #{protoseg_forward.3} parent=0 // loop_header_branch
    %12 = sbr.rel (%p10) target = $region8
  $region5: #{protoseg_forward.3} parent=0 // loop_body
    %s14 = ssub.s32 %s9, 1
    %s15 = ssub.s32 %s9, 2
    %s22 = sadd.s32 1, %s17
    %p23 = scmp.ge.s32.totalorder %s22, 1
    %s24 = scalar_select %p23, 0, %s22
    %s25 = sadd.s32 1, %s16
    %s26 = scalar_select %p23, %s25, %s16
    %p27 = scmp.ge.s32.totalorder %s26, 2
    %s28 = scalar_select %p27, 0, %s26
    %s29 = ssub.s32 %s16, %s28
    %p30 = scmp.eq.s32.totalorder %s29, 0
    %s32 = sadd.s32 %s31, 1
    %s33 = scalar_select %p30, %s31, %s32
    %p36 = pneg %p30
    %p37 = scmp.eq.s32.totalorder %s9, 1
    %p38 = por %p36, %p37
    %p39 = scmp.ne.s32.totalorder %s31, %s34
    %p40 = scmp.eq.s32.totalorder %s9, 0
    %p41 = por %p39, %p40
    %p42 = scmp.ne.s32.totalorder %s31, %s34
    %p43 = scmp.eq.s32.totalorder %s14, 1
    %p44 = por %p42, %p43
    %p45 = scmp.ne.s32.totalorder %s34, %s35
    %p46 = scmp.eq.s32.totalorder %s14, 0
    %p47 = por %p45, %p46
    %p48 = scmp.ne.s32.totalorder %s34, %s35
    %p49 = scmp.eq.s32.totalorder %s15, 1
    %p50 = por %p48, %p49
    %p52 = scmp.ne.s32.totalorder %s35, %s51
    %p53 = scmp.eq.s32.totalorder %s15, 0
    %p54 = por %p52, %p53
    %s55 = ssub.s32 %s16, %s28
    %p56 = scmp.eq.s32.totalorder %s55, 0
    %s58 = sadd.s32 %s57, 1
    %s59 = scalar_select %p56, %s57, %s58
    %p62 = pneg %p56
    %p63 = scmp.eq.s32.totalorder %s9, 1
    %p64 = por %p62, %p63
    %p65 = scmp.ne.s32.totalorder %s57, %s60
    %p66 = scmp.eq.s32.totalorder %s9, 0
    %p67 = por %p65, %p66
    %p68 = scmp.ne.s32.totalorder %s57, %s60
    %p69 = scmp.eq.s32.totalorder %s14, 1
    %p70 = por %p68, %p69
    %p71 = scmp.ne.s32.totalorder %s60, %s61
    %p72 = scmp.eq.s32.totalorder %s14, 0
    %p73 = por %p71, %p72
    %p74 = scmp.ne.s32.totalorder %s60, %s61
    %p75 = scmp.eq.s32.totalorder %s15, 1
    %p76 = por %p74, %p75
    %p78 = scmp.ne.s32.totalorder %s61, %s77
    %p79 = scmp.eq.s32.totalorder %s15, 0
    %p80 = por %p78, %p79
    %s81 = ssub.s32 %s16, %s28
    %s82 = ssub.s32 %s17, %s24
    %s83 = sor.u32 %s81, %s82
    %p84 = scmp.eq.s32.totalorder %s83, 0
    %s86 = sadd.s32 %s85, 1
    %s87 = scalar_select %p84, %s85, %s86
    %p90 = pneg %p84
    %p91 = scmp.eq.s32.totalorder %s9, 1
    %p92 = por %p90, %p91
    %p93 = scmp.ne.s32.totalorder %s85, %s88
    %p94 = scmp.eq.s32.totalorder %s9, 0
    %p95 = por %p93, %p94
    %p96 = scmp.ne.s32.totalorder %s85, %s88
    %p97 = scmp.eq.s32.totalorder %s14, 1
    %p98 = por %p96, %p97
    %p99 = scmp.ne.s32.totalorder %s88, %s89
    %p100 = scmp.eq.s32.totalorder %s14, 0
    %p101 = por %p99, %p100
    %p102 = scmp.ne.s32.totalorder %s88, %s89
    %p103 = scmp.eq.s32.totalorder %s15, 1
    %p104 = por %p102, %p103
    %p106 = scmp.ne.s32.totalorder %s89, %s105
    %p107 = scmp.eq.s32.totalorder %s15, 0
    %p108 = por %p106, %p107
    %s109 = ssub.s32 %s16, %s28
    %s110 = ssub.s32 %s17, %s24
    %s111 = sor.u32 %s109, %s110
    %p112 = scmp.eq.s32.totalorder %s111, 0
    %s114 = sadd.s32 %s113, 1
    %s115 = scalar_select %p112, %s113, %s114
    %p118 = pneg %p112
    %p119 = scmp.eq.s32.totalorder %s9, 1
    %p120 = por %p118, %p119
    %p121 = scmp.ne.s32.totalorder %s113, %s116
    %p122 = scmp.eq.s32.totalorder %s9, 0
    %p123 = por %p121, %p122
    %p124 = scmp.ne.s32.totalorder %s113, %s116
    %p125 = scmp.eq.s32.totalorder %s14, 1
    %p126 = por %p124, %p125
    %p127 = scmp.ne.s32.totalorder %s116, %s117
    %p128 = scmp.eq.s32.totalorder %s14, 0
    %p129 = por %p127, %p128
    %p130 = scmp.ne.s32.totalorder %s116, %s117
    %p131 = scmp.eq.s32.totalorder %s15, 1
    %p132 = por %p130, %p131
    %p134 = scmp.ne.s32.totalorder %s117, %s133
    %p135 = scmp.eq.s32.totalorder %s15, 0
    %p136 = por %p134, %p135
    %p137 = scmp.le.s32.totalorder 1, %s9
    %p138 = scmp.lt.s32.totalorder %s9, 3
    %p139 = pnand %p137, %p138
    %p140 = pneg %p139
    // Predicated region
    $region9: #{protoseg_forward.3} parent=5 // pred_check
      _
    $region10: #{protoseg_forward.3} parent=5 // pred_check_branch
      %142 = sbr.rel (%p139) target = $region12
    $region11: #{protoseg_forward.3} parent=5 // pred_region
      %s143 = ssub.s32 %s9, 1
    $region12: #{protoseg_forward.3} parent=5 // pred_fallthru
      _
    %p144 = scmp.lt.s32.totalorder %s9, 2
    // Predicated region
    $region13: #{protoseg_forward.3} parent=5 // pred_check
      %p145 = pneg %p144
    $region14: #{protoseg_forward.3} parent=5 // pred_check_branch
      %147 = sbr.rel (%p145) target = $region16
    $region15: #{protoseg_forward.3} parent=5 // pred_region
      // Predicated region
      $region17: #{protoseg_forward.3} parent=15 // pred_check
        %p148 = pneg %p41
      $region18: #{protoseg_forward.3} parent=15 // pred_check_branch
        %150 = sbr.rel (%p148) target = $region20
      $region19: #{protoseg_forward.3} parent=15 // pred_region
        %p151 = scmp.lt.s32.totalorder %s16, 1
        %s152 = scalar_select %p151, %s16, 1
        %s153 = smul.addr %s152, 2
        %s154 = scalar_lea.vmem %s0, %s153
      $region20: #{protoseg_forward.3} parent=15 // pred_fallthru
        _
      // Predicated region
      $region21: #{protoseg_forward.3} parent=15 // pred_check
        %p155 = pneg %p67
      $region22: #{protoseg_forward.3} parent=15 // pred_check_branch
        %157 = sbr.rel (%p155) target = $region24
      $region23: #{protoseg_forward.3} parent=15 // pred_region
        %p158 = scmp.lt.s32.totalorder %s16, 1
        %s159 = scalar_select %p158, %s16, 1
        %s160 = smul.addr %s159, 2
        %s161 = scalar_lea.vmem %s1, %s160
      $region24: #{protoseg_forward.3} parent=15 // pred_fallthru
        _
      // Predicated region
      $region25: #{protoseg_forward.3} parent=15 // pred_check
        %p162 = pneg %p95
      $region26: #{protoseg_forward.3} parent=15 // pred_check_branch
        %164 = sbr.rel (%p162) target = $region28
      $region27: #{protoseg_forward.3} parent=15 // pred_region
        %s165 = smul.u32 2, %s17
        %p166 = scmp.lt.s32.totalorder %s16, 1
        %s167 = scalar_select %p166, %s16, 1
        %p168 = scmp.lt.s32.totalorder %s165, 1
        %s169 = scalar_select %p168, %s165, 1
        %s170 = smul.addr %s167, 2
        %s171 = sadd.s32 %s169, %s170
        %s172 = smul.addr %s171, 4
        %s173 = scalar_lea.vmem %s2, %s172
        %s174 = smul.u32 2, %s17
      $region28: #{protoseg_forward.3} parent=15 // pred_fallthru
        _
    $region16: #{protoseg_forward.3} parent=5 // pred_fallthru
      _
    %p175 = scmp.le.s32.totalorder 1, %s9
    %p176 = scmp.lt.s32.totalorder %s9, 3
    %p177 = pnand %p175, %p176
    %p178 = pneg %p177
    // Predicated region
    $region29: #{protoseg_forward.3} parent=5 // pred_check
      _
    $region30: #{protoseg_forward.3} parent=5 // pred_check_branch
      %180 = sbr.rel (%p177) target = $region32
    $region31: #{protoseg_forward.3} parent=5 // pred_region
      %s181 = ssub.s32 %s9, 1
      %p182 = scmp.lt.s32.totalorder %s18, 1
      %s183 = scalar_select %p182, %s18, 1
      %s184 = smul.addr %s183, 2
      %s185 = scalar_lea.vmem %s0, %s184
      %p186 = pneg %p47
      %p187 = pneg %p44
      %p188 = scmp.lt.s32.totalorder %s18, 1
      %s189 = scalar_select %p188, %s18, 1
      %s190 = smul.addr %s189, 2
      %s191 = scalar_lea.vmem %s1, %s190
      %p192 = pneg %p73
      %p193 = pneg %p70
      %s194 = smul.u32 2, %s19
      %p195 = scmp.lt.s32.totalorder %s18, 1
      %s196 = scalar_select %p195, %s18, 1
      %p197 = scmp.lt.s32.totalorder %s194, 1
      %s198 = scalar_select %p197, %s194, 1
      %s199 = smul.addr %s196, 2
      %s200 = sadd.s32 %s198, %s199
      %s201 = smul.addr %s200, 4
      %s202 = scalar_lea.vmem %s2, %s201
      %p203 = pneg %p101
      %p204 = pneg %p98
      %p205 = pneg %p129
      %p206 = pneg %p126
      %s207 = smul.u32 2, %s19
      %p208 = scmp.lt.s32.totalorder %s18, 1
      %s209 = scalar_select %p208, %s18, 1
      %p210 = scmp.lt.s32.totalorder %s207, 1
      %s211 = scalar_select %p210, %s207, 1
      %s212 = smul.addr %s209, 2
      %s213 = sadd.s32 %s211, %s212
      %s214 = smul.addr %s213, 2
      %s215 = scalar_lea.vmem %s3, %s214
      %p216 = scmp.lt.s32.totalorder %s18, 1
      %s217 = scalar_select %p216, %s18, 1
      %s218 = smul.addr %s217, 2
      %s219 = scalar_lea.vmem %s0, %s218
      %p220 = scmp.lt.s32.totalorder %s18, 1
      %s221 = scalar_select %p220, %s18, 1
      %s222 = smul.addr %s221, 2
      %s223 = scalar_lea.vmem %s1, %s222
      %s224 = smul.u32 2, %s19
      %p225 = scmp.lt.s32.totalorder %s18, 1
      %s226 = scalar_select %p225, %s18, 1
      %p227 = scmp.lt.s32.totalorder %s224, 1
      %s228 = scalar_select %p227, %s224, 1
      %s229 = smul.addr %s226, 2
      %s230 = sadd.s32 %s228, %s229
      %s231 = smul.addr %s230, 4
      %s232 = scalar_lea.vmem %s2, %s231
      %s233 = smul.u32 2, %s19
      %s234 = smul.u32 2, %s19
      %p235 = scmp.lt.s32.totalorder %s18, 1
      %s236 = scalar_select %p235, %s18, 1
      %p237 = scmp.lt.s32.totalorder %s234, 1
      %s238 = scalar_select %p237, %s234, 1
      %s239 = smul.addr %s236, 2
      %s240 = sadd.s32 %s238, %s239
      %s241 = smul.addr %s240, 2
      %s242 = scalar_lea.vmem %s3, %s241
      %s243 = smul.u32 2, %s19
      %v244 = vld [vmem:[%s232] sm:$0xff]
      %v245 = vld [vmem:[%s219] sm:$0x3]
      %v246 = vld [vmem:[%s223] sm:$0x3]
      %248 = vset.pattern.permute.xlu0 0
      %249 = vperm.xlu0 %248, %v246
      %v250 = vpop.permute.xlu0 %249
      %v253 = vcombine.high %v244, %v244
      %vm254 = vcmask 31744
      %v256 = vsel %vm254, %v245, 0
      %vm258 = vcmask 1043456
      %v259 = vsel %vm258, %v244, 0
      %v261 = vsel %vm258, %v253, 0
      %263 = vmatprep.subr.mxu0 0.0
      %264 = vmatpush1.msra.mxu0 0.0
      %265 = vmatprep.subr.mxu0 0.0
      %266 = vmatpush1.msra.mxu0 0.0
      %267 = vmatprep.subr.mxu0 0.0
      %268 = vmatpush1.msra.mxu0 0.0
      %269 = vmatprep.subr.mxu0 0.0
      %270 = vmatpush1.msra.mxu0 0.0
      %271 = vmatprep.subr.mxu0 0.0
      %272 = vmatpush1.msra.mxu0 0.0
      %273 = vmatprep.subr.mxu0 0.0
      %274 = vmatpush1.msra.mxu0 0.0
      %275 = vmatprep.subr.mxu0 0.0
      %276 = vmatpush1.msra.mxu0 0.0
      %277 = vmatprep.subr.mxu0 0.0
      %278 = vmatpush1.msra.mxu0 0.0
      %279 = vmatprep.subr.mxu0 0.0
      %280 = vmatpush1.msra.mxu0 0.0
      %281 = vmatprep.subr.mxu0 0.0
      %282 = vmatpush1.msra.mxu0 0.0
      %283 = vmatprep.subr.mxu0 0.0
      %284 = vmatpush1.msra.mxu0 0.0
      %285 = vmatprep.subr.mxu0 0.0
      %286 = vmatpush1.msra.mxu0 0.0
      %287 = vmatprep.subr.mxu0 0.0
      %288 = vmatpush1.msra.mxu0 0.0
      %289 = vmatprep.subr.mxu0 0.0
      %290 = vmatpush1.msra.mxu0 0.0
      %291 = vmatprep.subr.mxu0 0.0
      %292 = vmatpush1.msra.mxu0 0.0
      %293 = vmatprep.subr.mxu0 %v261
      %294 = vmatpush1.msra.mxu0 %v259
      %295 = vmatprep.subr.mxu0 0.0
      %296 = vmatpush2.msra.mxu0 0.0
      %297 = vmatprep.subr.mxu0 0.0
      %298 = vmatpush2.msra.mxu0 0.0
      %299 = vmatprep.subr.mxu0 0.0
      %300 = vmatpush2.msra.mxu0 0.0
      %301 = vmatprep.subr.mxu0 0.0
      %302 = vmatpush2.msra.mxu0 0.0
      %303 = vmatprep.subr.mxu0 0.0
      %304 = vmatpush2.msra.mxu0 0.0
      %305 = vmatprep.subr.mxu0 0.0
      %306 = vmatpush2.msra.mxu0 0.0
      %307 = vmatprep.subr.mxu0 0.0
      %308 = vmatpush2.msra.mxu0 0.0
      %309 = vmatprep.subr.mxu0 0.0
      %310 = vmatpush2.msra.mxu0 0.0
      %311 = vmatprep.subr.mxu0 0.0
      %312 = vmatpush2.msra.mxu0 0.0
      %313 = vmatprep.subr.mxu0 0.0
      %314 = vmatpush2.msra.mxu0 0.0
      %315 = vmatprep.subr.mxu0 0.0
      %316 = vmatpush2.msra.mxu0 0.0
      %317 = vmatprep.subr.mxu0 0.0
      %318 = vmatpush2.msra.mxu0 0.0
      %319 = vmatprep.subr.mxu0 0.0
      %320 = vmatpush2.msra.mxu0 0.0
      %321 = vmatprep.subr.mxu0 0.0
      %322 = vmatpush2.msra.mxu0 0.0
      %323 = vmatprep.subr.mxu0 0.0
      %324 = vmatpush2.msra.mxu0 0.0
      %325 = vmatprep.subr.mxu0 0.0
      %326 = vmatpush2.msra.mxu0 0.0
      %327 = vmatprep.mubr.f32.mxu0 0.0
      %328 = vmatmul.mubr.f32.gmra.mxu0 %v256
      %v329 = vpop.f32.mrf.mxu0
      %v330 = vadd.f32 %v250, %v329
      %v331 = vpop.f32.mrf.mxu0
      %v332 = vadd.f32 %v250, %v331
      %333 = vdwg.mxu0
      %v336 = vrot.slane %v330, 7
      %v337 = vrot.slane %v332, 7
      %v340 = vsub.f32 %v330, %v336
      %v341 = vsub.f32 %v332, %v337
      %v342 = vsub.f32 0.0, %v340
      %v343 = vsub.f32 0.0, %v341
      %v344 = vmul.f32 %v342, 1.442695
      %v345 = vpow.pop %v344
      %v346 = vmul.f32 %v343, 1.442695
      %v347 = vpow.pop %v346
      %v348 = vadd.f32 %v345, 1.0
      %v349 = vadd.f32 %v347, 1.0
      %v350 = vrcp.pop %v348
      %v351 = vmul.f32 1.0, %v350
      %v352 = vrcp.pop %v349
      %v353 = vmul.f32 1.0, %v352
      %v354 = vsub.f32 1.0, %v351
      %v355 = vsub.f32 1.0, %v353
      %v358 = vrot.slane %v354, 1
      %v359 = vrot.slane %v355, 1
      %vm362 = vcmask 1040384
      %v363 = vsel %vm362, %v358, %v351
      %v364 = vsel %vm362, %v359, %v353
      %v367 = vcombine.low %v363, %v364
      %v369 = vunpack.c.l.s4 1983009808
      %v370 = vunpack.c.0.s8 %v369
      %v371 = vlaneseq
      %v372 = vshrl.u32 %v371, 7
      %v373 = vsub.s32 %v370, %v372
      %v374 = vrot.slane %v367, %v373
      %376 = vst [vmem:[%s242] sm:$0xf] %v374
      %s377 = smul.u32 2, %s19
      %p378 = scmp.lt.s32.totalorder %s18, 1
      %s379 = scalar_select %p378, %s18, 1
      %p380 = scmp.lt.s32.totalorder %s377, 1
      %s381 = scalar_select %p380, %s377, 1
      %s382 = smul.addr %s379, 2
      %s383 = sadd.s32 %s381, %s382
      %s384 = smul.addr %s383, 2
      %s385 = scalar_lea.vmem %s3, %s384
      // Predicated region
      $region33: #{protoseg_forward.3} parent=31 // pred_check
        %p386 = pneg %p126
      $region34: #{protoseg_forward.3} parent=31 // pred_check_branch
        %388 = sbr.rel (%p386) target = $region36
      $region35: #{protoseg_forward.3} parent=31 // pred_region
        %s389 = smul.u32 2, %s19
      $region36: #{protoseg_forward.3} parent=31 // pred_fallthru
        _
    $region32: #{protoseg_forward.3} parent=5 // pred_fallthru
      _
    %p390 = scmp.le.s32.totalorder 2, %s9
    // Predicated region
    $region37: #{protoseg_forward.3} parent=5 // pred_check
      %p391 = pneg %p390
    $region38: #{protoseg_forward.3} parent=5 // pred_check_branch
      %393 = sbr.rel (%p391) target = $region40
    $region39: #{protoseg_forward.3} parent=5 // pred_region
      %s394 = ssub.s32 %s9, 2
      // Predicated region
      $region41: #{protoseg_forward.3} parent=39 // pred_check
        %p395 = pneg %p132
      $region42: #{protoseg_forward.3} parent=39 // pred_check_branch
        %397 = sbr.rel (%p395) target = $region44
      $region43: #{protoseg_forward.3} parent=39 // pred_region
        %s398 = smul.u32 2, %s21
        %p399 = scmp.lt.s32.totalorder %s20, 1
        %s400 = scalar_select %p399, %s20, 1
        %p401 = scmp.lt.s32.totalorder %s398, 1
        %s402 = scalar_select %p401, %s398, 1
        %s403 = smul.addr %s400, 2
        %s404 = sadd.s32 %s402, %s403
        %s405 = smul.addr %s404, 2
        %s406 = scalar_lea.vmem %s3, %s405
      $region44: #{protoseg_forward.3} parent=39 // pred_fallthru
        _
    $region40: #{protoseg_forward.3} parent=5 // pred_fallthru
      _
  $region6: #{protoseg_forward.3} parent=0 // loop_footer
    %s13 = sadd.s32 1, %s9
  $region7: #{protoseg_forward.3} parent=0 // loop_footer_branch
    %8 = sbr.rel target = $region3
  $region8: #{protoseg_forward.3} parent=0 // loop_exit
    _

</llo_original>
